<compile_context>
chip_gen: v7x
topology: tpu7x:2x2x1
jax: 0.10.0
libtpu: 0.0.40
codegen_flags: <defaults>
</compile_context>

<pallas_src>
import math
import functools
import jax
import jax.numpy as jnp
from jax.experimental import pallas as pl
from jax.experimental.pallas import tpu as pltpu


def _gaussian_kernel(x_ref, o_ref, *, neg_inv_two_sigma):
    # exp(-x*x / two_sigma) == exp((x*x) * (-1/two_sigma))
    x = x_ref[...].astype(jnp.float32)
    o_ref[...] = jnp.exp((x * x) * neg_inv_two_sigma).astype(o_ref.dtype)


def gaussian(dist_map, delta_var=0.2, pmaps_threshold=0.9):
    two_sigma = delta_var * delta_var / -math.log(pmaps_threshold)
    neg_inv_two_sigma = -1.0 / two_sigma  # Python float -> immediate splat

    orig_shape = dist_map.shape
    dtype = dist_map.dtype
    n = dist_map.size

    # Pick the widest lane-dense slab width (multiple of 128) that divides n
    # exactly (no padding copy); otherwise pad only the small tail to 128.
    lane = None
    for cand in (2048, 1024, 512, 256, 128):
        if n % cand == 0:
            lane = cand
            break
    flat = dist_map.reshape(-1)
    pad = 0
    if lane is None:
        lane = 128
        pad = (-n) % lane
        flat = jnp.pad(flat, (0, pad))
    rows = flat.size // lane
    x2d = flat.reshape(rows, lane)

    # Tile rows targeting ~2 MiB per block. Double-buffered in + out blocks
    # (~4x tile bytes) stay under the 16 MiB v5e scoped-VMEM default, so this
    # is safe on all generations while being large enough to sit near the
    # HBM roofline.
    itemsize = jnp.dtype(dtype).itemsize
    target_bytes = 2 * 1024 * 1024
    if rows <= 8:
        tr = rows  # block equals the full array extent in the sublane dim
    else:
        tr = min(rows, max(8, target_bytes // (lane * itemsize)))
        tr = max(8, (tr // 8) * 8)  # keep sublane dim a multiple of 8
    grid = (pl.cdiv(rows, tr),)  # cdiv grid: partial last block is masked

    kernel = functools.partial(
        _gaussian_kernel, neg_inv_two_sigma=neg_inv_two_sigma)

    out2d = pl.pallas_call(
        kernel,
        out_shape=jax.ShapeDtypeStruct((rows, lane), dtype),
        grid_spec=pltpu.PrefetchScalarGridSpec(
            num_scalar_prefetch=0,
            grid=grid,
            in_specs=[pl.BlockSpec((tr, lane), lambda i: (i, 0))],
            out_specs=pl.BlockSpec((tr, lane), lambda i: (i, 0)),
        ),
        compiler_params=pltpu.CompilerParams(
            dimension_semantics=("parallel",)),
    )(x2d)

    out_flat = out2d.reshape(-1)
    if pad:
        out_flat = out_flat[:n]
    return out_flat.reshape(orig_shape)


if __name__ == "__main__":
    key = jax.random.PRNGKey(0)
    two_sigma = 0.2 * 0.2 / -math.log(0.9)

    # NCHW-style dist_map, small shape (aligned path: 2048 elems -> 1 row).
    x = jax.random.uniform(key, (2, 4, 16, 16), dtype=jnp.float32) * 2.0
    y = jax.block_until_ready(gaussian(x))
    y_ref = jnp.exp(-x * x / two_sigma)
    assert y.shape == x.shape
    assert jnp.allclose(y, y_ref, atol=1e-6, rtol=1e-5)

    # Unaligned shape exercises the minimal-tail-padding path.
    x2 = jax.random.uniform(jax.random.PRNGKey(1), (2, 3, 17, 5),
                            dtype=jnp.float32) * 2.0
    y2 = jax.block_until_ready(gaussian(x2))
    y2_ref = jnp.exp(-x2 * x2 / two_sigma)
    assert y2.shape == x2.shape
    assert jnp.allclose(y2, y2_ref, atol=1e-6, rtol=1e-5)

    # Larger multi-row case to exercise the tiled grid path.
    x3 = jax.random.normal(jax.random.PRNGKey(2), (4, 8, 64, 64),
                           dtype=jnp.float32)
    y3 = jax.block_until_ready(gaussian(x3))
    y3_ref = jnp.exp(-x3 * x3 / two_sigma)
    assert jnp.allclose(y3, y3_ref, atol=1e-6, rtol=1e-5)

    print("KERNEL_OK")
</pallas_src>

<mosaic_0001>
module attributes {stable_mosaic.version = 11 : i64} {
  func.func @_gaussian_kernel(%arg0: i32, %arg1: memref<1x2048xf32, #tpu.memory_space<vmem>>, %arg2: memref<1x2048xf32, #tpu.memory_space<vmem>>) attributes {dimension_semantics = [#tpu.dimension_semantics<parallel>], iteration_bounds = array<i64: 1>, scalar_prefetch = 0 : i64, scratch_operands = 0 : i64, tpu.core_type = #tpu.core_type<tc>, window_params = [{transform_indices = @transform_0, window_bounds = array<i64: 1, 2048>}, {transform_indices = @transform_1, window_bounds = array<i64: 1, 2048>}]} {
    %c0 = arith.constant 0 : index
    %c0_0 = arith.constant 0 : index
    %0 = vector.load %arg1[%c0, %c0_0] : memref<1x2048xf32, #tpu.memory_space<vmem>>, vector<1x2048xf32>
    %1 = arith.mulf %0, %0 : vector<1x2048xf32>
    %cst = arith.constant -2.63401294 : f32
    %2 = vector.broadcast %cst : f32 to vector<1x2048xf32>
    %3 = arith.mulf %1, %2 : vector<1x2048xf32>
    %4 = math.exp %3 : vector<1x2048xf32>
    %c0_1 = arith.constant 0 : index
    %c0_2 = arith.constant 0 : index
    %5 = vector.load %arg2[%c0_1, %c0_2] : memref<1x2048xf32, #tpu.memory_space<vmem>>, vector<1x2048xf32>
    tpu.vector_store %arg2[%c0_1, %c0_2], %4 {strides = array<i32>} : memref<1x2048xf32, #tpu.memory_space<vmem>>, vector<1x2048xf32>,
    return
  }
  func.func @transform_0(%arg0: i32) -> (i32, i32) {
    %c0_i32 = arith.constant 0 : i32
    %c0_i32_0 = arith.constant 0 : i32
    return %arg0, %c0_i32 : i32, i32
  }
  func.func @transform_1(%arg0: i32) -> (i32, i32) {
    %c0_i32 = arith.constant 0 : i32
    %c0_i32_0 = arith.constant 0 : i32
    return %arg0, %c0_i32 : i32, i32
  }
}

</mosaic_0001>

<llo_original>
// kernel: tpu_custom_call.1
$region0: #{tpu_custom_call.1}
  #allocation0 [shape = 'u32[]', space=smem, size = 0x4, offset = 0x4, fixed_abs, tag = 'smem constant byte address 0x4 - core index']
  #allocation1 [shape = 'u32[144,128]{1,0:T(1,128)}', space=vmem, size = 0x12000, scoped, tag = 'internal scratch']
  %s0 = inlined_call_operand.hbm [shape: f32[1,2048], index: 0, kind: input, shape index: {}]
  %s1 = inlined_call_operand.hbm [shape: f32[1,2048], index: 1, kind: output, shape index: {}]
  %s2 = sld [smem:[#allocation0]]
  $region18: #{tpu_custom_call.1} parent=0
    _
  %s4 = ssub.s32 1, %s2
  %s5 = scalar_select 0, %s4, %s2
  $region1: #{tpu_custom_call.1} parent=0
    #allocation2 [shape = 'u8[8192]{0}', space=vmem, size = 0x2000, scoped, tag = 'input window, operand 0, single buffered']
    #allocation3 [shape = 's32[1]{0}', space=sflag, size = 0x4, scoped, tag = 'scoped memory for tpu_custom_call.1']
    #allocation4 [shape = 's32[1]{0}', space=sflag, size = 0x4, scoped, tag = 'scoped memory for tpu_custom_call.1']
    #allocation5 [shape = 'u8[8192]{0}', space=vmem, size = 0x2000, scoped, tag = 'output window, operand 0, single buffered']
    %6 = vsyncpa [#allocation3], 0
    %7 = vsyncpa [#allocation4], 0
    // Predicated region
    $region2: #{tpu_custom_call.1} parent=1 // pred_check
      _
    $region3: #{tpu_custom_call.1} parent=1 // pred_check_branch
      %9 = sbr.rel (0) target = $region5
    $region4: #{tpu_custom_call.1} parent=1 // pred_region
      %s11 = ssub.s32 256, 256
      %12 = vsyncadd [#allocation3], %s11
      %s14 = sshll.u32 [#allocation2], 4
      %s15 = int_to_ptr.vmem [resolvable:$true] %s14
      %17 = dma.hbm_to_vmem [thread:$0]  %s0, 256, %s15, [#allocation3]
    $region5: #{tpu_custom_call.1} parent=1 // pred_fallthru
      _
    // Predicated region
    $region6: #{tpu_custom_call.1} parent=1 // pred_check
      _
    $region7: #{tpu_custom_call.1} parent=1 // pred_check_branch
      %19 = sbr.rel (0) target = $region9
    $region8: #{tpu_custom_call.1} parent=1 // pred_region
      %20 = dma.done [#allocation3], 256
    $region9: #{tpu_custom_call.1} parent=1 // pred_fallthru
      _
    %v21 = vld [vmem:[#allocation2] sm:$0xff]
    %v22 = vld [vmem:[#allocation2 + $0x8] sm:$0xff]
    %v23 = vmul.f32 %v21, %v21
    %v24 = vmul.f32 %v22, %v22
    %v25 = vmul.f32 %v23, -2.634013
    %v26 = vmul.f32 %v24, -2.634013
    %v27 = vmul.f32 %v25, 1.442695
    %v28 = vpow.pop %v27
    %v29 = vmul.f32 %v26, 1.442695
    %v30 = vpow.pop %v29
    %31 = vst [vmem:[#allocation5] sm:$0xff] %v28
    %32 = vst [vmem:[#allocation5 + $0x8] sm:$0xff] %v30
    // Predicated region
    $region10: #{tpu_custom_call.1} parent=1 // pred_check
      _
    $region11: #{tpu_custom_call.1} parent=1 // pred_check_branch
      %34 = sbr.rel (0) target = $region13
    $region12: #{tpu_custom_call.1} parent=1 // pred_region
      %s36 = ssub.s32 256, 256
      %37 = vsyncadd [#allocation4], %s36
      %s39 = sshll.u32 [#allocation5], 4
      %s40 = int_to_ptr.vmem [resolvable:$true] %s39
      %42 = dma.vmem_to_hbm [thread:$0]  %s40, 256, %s1, [#allocation4]
    $region13: #{tpu_custom_call.1} parent=1 // pred_fallthru
      _
    // Predicated region
    $region14: #{tpu_custom_call.1} parent=1 // pred_check
      _
    $region15: #{tpu_custom_call.1} parent=1 // pred_check_branch
      %44 = sbr.rel (0) target = $region17
    $region16: #{tpu_custom_call.1} parent=1 // pred_region
      %45 = dma.done [#allocation4], 256
    $region17: #{tpu_custom_call.1} parent=1 // pred_fallthru
      _
    %46 = vsyncpa [#allocation3], 1
    %47 = vsyncpa [#allocation4], 1

</llo_original>
